<compile_context>
chip_gen: v5e
topology: v5e:2x2
jax: 0.10.0
libtpu: 0.0.40
codegen_flags: <defaults>
</compile_context>

<pallas_src>
import jax
import jax.numpy as jnp
from jax.experimental import pallas as pl
from jax.experimental.pallas import tpu as pltpu

EPS = 1e-6


def _l2norm_cols(x):
    """Channel (sublane-axis) L2 normalization of a (C, M) block, computed in f32."""
    xf = x.astype(jnp.float32)
    return xf * jax.lax.rsqrt(jnp.sum(xf * xf, axis=0, keepdims=True) + EPS)


def _tile_body(a_n, b_ref, o_ref):
    # a_n: (C, N) normalized x1; b_ref: (C, TM) x2 m-tile; o_ref: (N, TM) output block.
    b_n = _l2norm_cols(b_ref[...])

    # s[k, m] = sum_c a_n[c, k] * b_n[c, m] -- already in the output (k, m) orientation.
    s = jax.lax.dot_general(
        a_n, b_n, (((0,), (0,)), ((), ())), preferred_element_type=jnp.float32
    )  # (N, TM)
    s = jnp.maximum(s, 0.0)  # ReLU

    # Final FeatureL2Norm over k (rows), per column m. The sum of squares is done on the
    # (nearly idle) MXU via a ones-row matmul instead of a VALU cross-sublane reduce.
    sq = s * s
    ones_lhs = jnp.ones((8, s.shape[0]), jnp.float32)
    ssum = jax.lax.dot_general(
        ones_lhs, sq, (((1,), (0,)), ((), ())), preferred_element_type=jnp.float32
    )  # (8, TM), all rows identical
    inv = jax.lax.rsqrt(ssum[0:1, :] + EPS)  # (1, TM), EUP slot

    if o_ref.dtype == jnp.float32:
        # Store ReLU'd volume, then scale in place: avoids carrying a second full (N, TM)
        # f32 temporary through the store path (critical on v5e's single vst slot).
        o_ref[...] = s
        o_ref[...] *= inv
    else:
        o_ref[...] = (s * inv).astype(o_ref.dtype)


def _make_kernel(hoist_a: bool):
    if hoist_a:
        def kernel(a_ref, b_ref, o_ref, a_n_ref):
            # A depends only on the batch index; recompute its normalization only on the
            # first m-tile of each batch (m axis is "arbitrary" => sequential per core).
            @pl.when(pl.program_id(1) == 0)
            def _():
                a_n_ref[...] = _l2norm_cols(a_ref[...])

            _tile_body(a_n_ref[...], b_ref, o_ref)
    else:
        def kernel(a_ref, b_ref, o_ref):
            _tile_body(_l2norm_cols(a_ref[...]), b_ref, o_ref)
    return kernel


def _footprint_bytes(tm, n, c, in_bytes, out_bytes, hoist_a):
    """Conservative VMEM footprint for one grid step (double buffers + f32 intermediates)."""
    a_res = 2 * c * n * in_bytes                 # resident A block (count double-buffered)
    a_scr = (c * n * 4) if hoist_a else 0        # f32 normalized-A scratch
    b_tile = 2 * c * tm * in_bytes               # B m-tile, double buffered
    o_tile = 2 * n * tm * out_bytes              # output block, double buffered
    tmp = 2 * n * tm * 4                         # f32 intermediates (s, s*s)
    return a_res + a_scr + b_tile + o_tile + tmp


def _pick_tm(n, n_pad, c, in_bytes, out_bytes, hoist_a):
    """Largest 128-multiple m-tile dividing n_pad whose footprint stays under ~20 MiB."""
    budget = 20 * 1024 * 1024
    tm = 128
    while (
        tm * 2 <= n_pad
        and n_pad % (tm * 2) == 0
        and _footprint_bytes(tm * 2, n, c, in_bytes, out_bytes, hoist_a) <= budget
    ):
        tm *= 2
    return tm
    # Note: for extremely large N the full-k output block may exceed VMEM even at tm=128;
    # that would need a two-pass k-tiled normalization (not needed at CNNGeometric sizes).


def correlation_layer(x1, x2):
    """x1, x2: (B, C, H, W). Returns (B, H*W, H, W), matching the PyTorch module."""
    b, c, h, w = x1.shape
    n = h * w
    n_pad = ((n + 127) // 128) * 128  # lane-dense output columns

    # Pure layout plumbing (no compute):
    # A: k = wA*H + hA -> transpose (b,c,h,w)->(b,c,w,h) then flatten spatial.
    a_in = jnp.transpose(x1, (0, 1, 3, 2)).reshape(b, c, n)  # (B, C, N)
    # B: m = hB*W + wB -> plain reshape, channel-major (lane-dense spatial axis); pad m.
    b_in = x2.reshape(b, c, n)                               # (B, C, N)
    if n_pad != n:
        b_in = jnp.pad(b_in, ((0, 0), (0, 0), (0, n_pad - n)))  # zero cols -> zero out cols

    in_bytes = jnp.dtype(x1.dtype).itemsize
    out_bytes = jnp.dtype(x1.dtype).itemsize

    # Hoist A-norm (scratch + pl.when) only when the batch axis alone can feed both v7x TCs;
    # for B == 1 keep both grid axes "parallel" instead.
    hoist_a = b >= 2
    tm = _pick_tm(n, n_pad, c, in_bytes, out_bytes, hoist_a)
    m_tiles = n_pad // tm

    footprint = _footprint_bytes(tm, n, c, in_bytes, out_bytes, hoist_a)
    vmem_limit = int(max(32 * 1024 * 1024, footprint + 4 * 1024 * 1024))

    scratch = [pltpu.VMEM((c, n), jnp.float32)] if hoist_a else []
    semantics = ("parallel", "arbitrary") if hoist_a else ("parallel", "parallel")

    cost = pl.CostEstimate(
        flops=int(b * n * n_pad * (2 * c + 2 * 8 + 6)),
        transcendentals=int(b * (n + 2 * n_pad)),
        bytes_accessed=int(2 * b * c * n * in_bytes + b * n * n_pad * out_bytes),
    )

    out = pl.pallas_call(
        _make_kernel(hoist_a),
        out_shape=jax.ShapeDtypeStruct((b, n, n_pad), x1.dtype),
        grid_spec=pltpu.PrefetchScalarGridSpec(
            num_scalar_prefetch=0,
            grid=(b, m_tiles),
            in_specs=[
                # A is constant across the m-tile axis -> Pallas keeps it resident in VMEM.
                pl.BlockSpec((None, c, n), lambda bi, mi: (bi, 0, 0)),
                pl.BlockSpec((None, c, tm), lambda bi, mi: (bi, 0, mi)),
            ],
            out_specs=pl.BlockSpec((None, n, tm), lambda bi, mi: (bi, 0, mi)),
            scratch_shapes=scratch,
        ),
        compiler_params=pltpu.CompilerParams(
            dimension_semantics=semantics,
            vmem_limit_bytes=vmem_limit,
        ),
        cost_estimate=cost,
    )(a_in, b_in)                                            # (B, N[k], Np[m])

    if n_pad != n:
        out = out[:, :, :n]
    # Free reshape: m = hB*W + wB decomposes directly into (hB, wB).
    return out.reshape(b, n, h, w)


def _reference(x1, x2):
    """Pure-JAX mirror of the PyTorch module for verification."""
    def l2norm(f, axis=1):
        return f / jnp.sqrt(jnp.sum(f * f, axis=axis, keepdims=True) + EPS)

    fA = l2norm(x1)
    fB = l2norm(x2)
    b, c, h, w = fA.shape
    A = jnp.transpose(fA, (0, 1, 3, 2)).reshape(b, c, h * w)         # (b, c, hw) k=wA*H+hA
    Bm = jnp.transpose(fB.reshape(b, c, h * w), (0, 2, 1))           # (b, hw, c) m=hB*W+wB
    mul = jnp.einsum("bmc,bck->bmk", Bm, A)                          # (b, hw, hw)
    corr = jnp.transpose(mul.reshape(b, h, w, h * w), (0, 3, 1, 2))  # (b, hw, h, w)
    corr = jnp.maximum(corr, 0.0)
    return l2norm(corr, axis=1)


if __name__ == "__main__":
    key = jax.random.PRNGKey(0)
    k1, k2 = jax.random.split(key)
    B, C, H, W = 2, 4, 16, 16
    x1 = jax.random.normal(k1, (B, C, H, W), dtype=jnp.float32)
    x2 = jax.random.normal(k2, (B, C, H, W), dtype=jnp.float32)

    out = jax.jit(correlation_layer)(x1, x2)
    out = jax.block_until_ready(out)

    ref = _reference(x1, x2)
    assert out.shape == (B, H * W, H, W), out.shape
    assert jnp.allclose(out, ref, atol=2e-5, rtol=2e-5), float(jnp.max(jnp.abs(out - ref)))

    print("KERNEL_OK")
</pallas_src>

<mosaic_0001>
module attributes {stable_mosaic.version = 11 : i64} {
  func.func @kernel(%arg0: i32, %arg1: i32, %arg2: memref<1x4x256xf32, #tpu.memory_space<vmem>>, %arg3: memref<1x4x256xf32, #tpu.memory_space<vmem>>, %arg4: memref<1x256x256xf32, #tpu.memory_space<vmem>>, %arg5: memref<4x256xf32, #tpu.memory_space<vmem>>) attributes {dimension_semantics = [#tpu.dimension_semantics<parallel>, #tpu.dimension_semantics<arbitrary>], iteration_bounds = array<i64: 2, 1>, scalar_prefetch = 0 : i64, scratch_operands = 1 : i64, tpu.core_type = #tpu.core_type<tc>, window_params = [{transform_indices = @transform_0, window_bounds = array<i64: 1, 4, 256>}, {transform_indices = @transform_1, window_bounds = array<i64: 1, 4, 256>}, {transform_indices = @transform_2, window_bounds = array<i64: 1, 256, 256>}]} {
    %c0_i32 = arith.constant 0 : i32
    %0 = arith.cmpi eq, %arg1, %c0_i32 : i32
    %1 = arith.extui %0 : i1 to i32
    %c0_i32_0 = arith.constant 0 : i32
    %2 = arith.cmpi ne, %1, %c0_i32_0 : i32
    scf.if %2 {
      %c0_20 = arith.constant 0 : index
      %c0_21 = arith.constant 0 : index
      %c0_22 = arith.constant 0 : index
      %34 = vector.load %arg2[%c0_20, %c0_21, %c0_22] : memref<1x4x256xf32, #tpu.memory_space<vmem>>, vector<1x4x256xf32>
      %35 = vector.shape_cast %34 : vector<1x4x256xf32> to vector<4x256xf32>
      %36 = arith.mulf %35, %35 : vector<4x256xf32>
      %cst_23 = arith.constant dense<0.000000e+00> : vector<256xf32>
      %37 = vector.multi_reduction <add>, %36, %cst_23 [0] : vector<4x256xf32> to vector<256xf32>
      %38 = vector.shape_cast %37 : vector<256xf32> to vector<1x256xf32>
      %cst_24 = arith.constant 9.99999997E-7 : f32
      %39 = vector.broadcast %cst_24 : f32 to vector<1x256xf32>
      %40 = arith.addf %38, %39 : vector<1x256xf32>
      %41 = math.rsqrt %40 : vector<1x256xf32>
      %42 = vector.broadcast %41 : vector<1x256xf32> to vector<4x256xf32>
      %43 = arith.mulf %35, %42 : vector<4x256xf32>
      %c0_25 = arith.constant 0 : index
      %c0_26 = arith.constant 0 : index
      %44 = vector.load %arg5[%c0_25, %c0_26] : memref<4x256xf32, #tpu.memory_space<vmem>>, vector<4x256xf32>
      tpu.vector_store %arg5[%c0_25, %c0_26], %43 {strides = array<i32>} : memref<4x256xf32, #tpu.memory_space<vmem>>, vector<4x256xf32>,
    } else {
    }
    %c0 = arith.constant 0 : index
    %c0_1 = arith.constant 0 : index
    %3 = vector.load %arg5[%c0, %c0_1] : memref<4x256xf32, #tpu.memory_space<vmem>>, vector<4x256xf32>
    %c0_2 = arith.constant 0 : index
    %c0_3 = arith.constant 0 : index
    %c0_4 = arith.constant 0 : index
    %4 = vector.load %arg3[%c0_2, %c0_3, %c0_4] : memref<1x4x256xf32, #tpu.memory_space<vmem>>, vector<1x4x256xf32>
    %5 = vector.shape_cast %4 : vector<1x4x256xf32> to vector<4x256xf32>
    %6 = arith.mulf %5, %5 : vector<4x256xf32>
    %cst = arith.constant dense<0.000000e+00> : vector<256xf32>
    %7 = vector.multi_reduction <add>, %6, %cst [0] : vector<4x256xf32> to vector<256xf32>
    %8 = vector.shape_cast %7 : vector<256xf32> to vector<1x256xf32>
    %cst_5 = arith.constant 9.99999997E-7 : f32
    %9 = vector.broadcast %cst_5 : f32 to vector<1x256xf32>
    %10 = arith.addf %8, %9 : vector<1x256xf32>
    %11 = math.rsqrt %10 : vector<1x256xf32>
    %12 = vector.broadcast %11 : vector<1x256xf32> to vector<4x256xf32>
    %13 = arith.mulf %5, %12 : vector<4x256xf32>
    %cst_6 = arith.constant dense<0.000000e+00> : vector<256x256xf32>
    %14 = tpu.matmul %3, %13, %cst_6 {dimension_numbers = #tpu.dot_dimension_numbers<[0], [0], [1], [1], [0, 1, 1, 1], [], []>} : vector<4x256xf32>, vector<4x256xf32>, vector<256x256xf32> -> vector<256x256xf32>
    %cst_7 = arith.constant 0.000000e+00 : f32
    %15 = vector.broadcast %cst_7 : f32 to vector<256x256xf32>
    %16 = arith.maximumf %14, %15 : vector<256x256xf32>
    %17 = arith.mulf %16, %16 : vector<256x256xf32>
    %cst_8 = arith.constant 1.000000e+00 : f32
    %18 = vector.broadcast %cst_8 : f32 to vector<8x256xf32>
    %cst_9 = arith.constant dense<0.000000e+00> : vector<8x256xf32>
    %19 = tpu.matmul %18, %17, %cst_9 {dimension_numbers = #tpu.dot_dimension_numbers<[1], [0], [0], [1], [0, 0, 1, 1], [], []>} : vector<8x256xf32>, vector<256x256xf32>, vector<8x256xf32> -> vector<8x256xf32>
    %20 = vector.extract_strided_slice %19 {offsets = [0, 0], sizes = [1, 256], strides = [1, 1]} : vector<8x256xf32> to vector<1x256xf32>
    %cst_10 = arith.constant 9.99999997E-7 : f32
    %21 = vector.broadcast %cst_10 : f32 to vector<1x256xf32>
    %22 = arith.addf %20, %21 : vector<1x256xf32>
    %23 = math.rsqrt %22 : vector<1x256xf32>
    %c0_11 = arith.constant 0 : index
    %c0_12 = arith.constant 0 : index
    %c0_13 = arith.constant 0 : index
    %24 = vector.load %arg4[%c0_11, %c0_12, %c0_13] : memref<1x256x256xf32, #tpu.memory_space<vmem>>, vector<1x256x256xf32>
    %25 = vector.shape_cast %24 : vector<1x256x256xf32> to vector<256x256xf32>
    %26 = vector.shape_cast %16 : vector<256x256xf32> to vector<1x256x256xf32>
    tpu.vector_store %arg4[%c0_11, %c0_12, %c0_13], %26 {strides = array<i32>} : memref<1x256x256xf32, #tpu.memory_space<vmem>>, vector<1x256x256xf32>,
    %c0_14 = arith.constant 0 : index
    %c0_15 = arith.constant 0 : index
    %c0_16 = arith.constant 0 : index
    %27 = vector.load %arg4[%c0_14, %c0_15, %c0_16] : memref<1x256x256xf32, #tpu.memory_space<vmem>>, vector<1x256x256xf32>
    %28 = vector.shape_cast %27 : vector<1x256x256xf32> to vector<256x256xf32>
    %29 = vector.broadcast %23 : vector<1x256xf32> to vector<256x256xf32>
    %30 = arith.mulf %28, %29 : vector<256x256xf32>
    %c0_17 = arith.constant 0 : index
    %c0_18 = arith.constant 0 : index
    %c0_19 = arith.constant 0 : index
    %31 = vector.load %arg4[%c0_17, %c0_18, %c0_19] : memref<1x256x256xf32, #tpu.memory_space<vmem>>, vector<1x256x256xf32>
    %32 = vector.shape_cast %31 : vector<1x256x256xf32> to vector<256x256xf32>
    %33 = vector.shape_cast %30 : vector<256x256xf32> to vector<1x256x256xf32>
    tpu.vector_store %arg4[%c0_17, %c0_18, %c0_19], %33 {strides = array<i32>} : memref<1x256x256xf32, #tpu.memory_space<vmem>>, vector<1x256x256xf32>,
    return
  }
  func.func @transform_0(%arg0: i32, %arg1: i32) -> (i32, i32, i32) {
    %c0_i32 = arith.constant 0 : i32
    %c0_i32_0 = arith.constant 0 : i32
    %c0_i32_1 = arith.constant 0 : i32
    return %arg0, %c0_i32, %c0_i32_0 : i32, i32, i32
  }
  func.func @transform_1(%arg0: i32, %arg1: i32) -> (i32, i32, i32) {
    %c0_i32 = arith.constant 0 : i32
    %c0_i32_0 = arith.constant 0 : i32
    return %arg0, %c0_i32, %arg1 : i32, i32, i32
  }
  func.func @transform_2(%arg0: i32, %arg1: i32) -> (i32, i32, i32) {
    %c0_i32 = arith.constant 0 : i32
    %c0_i32_0 = arith.constant 0 : i32
    return %arg0, %c0_i32, %arg1 : i32, i32, i32
  }
}

</mosaic_0001>

<llo_original>
// kernel: correlation_layer.1
$region0: #{correlation_layer.1}
  #allocation0 [shape = 'u32[]', space=smem, size = 0x4, offset = 0x4, fixed_abs, tag = 'smem constant byte address 0x4 - core index']
  #allocation1 [shape = 'u32[72,128]{1,0:T(1,128)}', space=vmem, size = 0x9000, scoped, tag = 'internal scratch']
  #allocation2 [shape = 'f32[4,256]{1,0:T(4,128)}', space=vmem, size = 0x1000, scoped, tag = 'scratch operand']
  %s0 = inlined_call_operand.vmem [shape: f32[2,4,256], index: 0, kind: input, shape index: {}]
  %s1 = inlined_call_operand.vmem [shape: f32[2,4,256], index: 1, kind: input, shape index: {}]
  %s2 = inlined_call_operand.vmem [shape: f32[2,256,256], index: 2, kind: output, shape index: {}]
  %s3 = sld [smem:[#allocation0]]
  $region45: #{correlation_layer.1} parent=0
    _
  %s5 = ssub.s32 1, %s3
  %s6 = scalar_select 0, %s5, %s3
  loop: start=0, step=1, limit=4
  $region2: #{correlation_layer.1} parent=0 // loop_pre_header
    _
  $region3: #{correlation_layer.1} parent=0 // loop_header
    %s8 = sphi 0, %s12
    %p9 = scmp.ge.s32.totalorder %s8, 4
    %s15 = sphi 0, %s27
    %s16 = sphi 0, %s23
    %s17 = sphi 0, %s15
    %s18 = sphi 0, %s16
    %s19 = sphi 0, %s17
    %s20 = sphi 0, %s18
    %s30 = sphi 0, %s32
    %s33 = sphi 0, %s30
    %s34 = sphi 0, %s33
    %s50 = sphi 0, %s34
    %s58 = sphi 0, %s60
    %s61 = sphi 0, %s58
    %s62 = sphi 0, %s61
    %s78 = sphi 0, %s62
    %s86 = sphi 0, %s88
    %s89 = sphi 0, %s86
    %s90 = sphi 0, %s89
    %s106 = sphi 0, %s90
  $region4: #{correlation_layer.1} parent=0 // loop_header_branch
    %11 = sbr.rel (%p9) target = $region8
  $region5: #{correlation_layer.1} parent=0 // loop_body
    %s13 = ssub.s32 %s8, 1
    %s14 = ssub.s32 %s8, 2
    %s21 = sadd.s32 1, %s16
    %p22 = scmp.ge.s32.totalorder %s21, 1
    %s23 = scalar_select %p22, 0, %s21
    %s24 = sadd.s32 1, %s15
    %s25 = scalar_select %p22, %s24, %s15
    %p26 = scmp.ge.s32.totalorder %s25, 2
    %s27 = scalar_select %p26, 0, %s25
    %s28 = ssub.s32 %s15, %s27
    %p29 = scmp.eq.s32.totalorder %s28, 0
    %s31 = sadd.s32 %s30, 1
    %s32 = scalar_select %p29, %s30, %s31
    %p35 = pneg %p29
    %p36 = scmp.eq.s32.totalorder %s8, 1
    %p37 = por %p35, %p36
    %p38 = scmp.ne.s32.totalorder %s30, %s33
    %p39 = scmp.eq.s32.totalorder %s8, 0
    %p40 = por %p38, %p39
    %p41 = scmp.ne.s32.totalorder %s30, %s33
    %p42 = scmp.eq.s32.totalorder %s13, 1
    %p43 = por %p41, %p42
    %p44 = scmp.ne.s32.totalorder %s33, %s34
    %p45 = scmp.eq.s32.totalorder %s13, 0
    %p46 = por %p44, %p45
    %p47 = scmp.ne.s32.totalorder %s33, %s34
    %p48 = scmp.eq.s32.totalorder %s14, 1
    %p49 = por %p47, %p48
    %p51 = scmp.ne.s32.totalorder %s34, %s50
    %p52 = scmp.eq.s32.totalorder %s14, 0
    %p53 = por %p51, %p52
    %s54 = ssub.s32 %s15, %s27
    %s55 = ssub.s32 %s16, %s23
    %s56 = sor.u32 %s54, %s55
    %p57 = scmp.eq.s32.totalorder %s56, 0
    %s59 = sadd.s32 %s58, 1
    %s60 = scalar_select %p57, %s58, %s59
    %p63 = pneg %p57
    %p64 = scmp.eq.s32.totalorder %s8, 1
    %p65 = por %p63, %p64
    %p66 = scmp.ne.s32.totalorder %s58, %s61
    %p67 = scmp.eq.s32.totalorder %s8, 0
    %p68 = por %p66, %p67
    %p69 = scmp.ne.s32.totalorder %s58, %s61
    %p70 = scmp.eq.s32.totalorder %s13, 1
    %p71 = por %p69, %p70
    %p72 = scmp.ne.s32.totalorder %s61, %s62
    %p73 = scmp.eq.s32.totalorder %s13, 0
    %p74 = por %p72, %p73
    %p75 = scmp.ne.s32.totalorder %s61, %s62
    %p76 = scmp.eq.s32.totalorder %s14, 1
    %p77 = por %p75, %p76
    %p79 = scmp.ne.s32.totalorder %s62, %s78
    %p80 = scmp.eq.s32.totalorder %s14, 0
    %p81 = por %p79, %p80
    %s82 = ssub.s32 %s15, %s27
    %s83 = ssub.s32 %s16, %s23
    %s84 = sor.u32 %s82, %s83
    %p85 = scmp.eq.s32.totalorder %s84, 0
    %s87 = sadd.s32 %s86, 1
    %s88 = scalar_select %p85, %s86, %s87
    %p91 = pneg %p85
    %p92 = scmp.eq.s32.totalorder %s8, 1
    %p93 = por %p91, %p92
    %p94 = scmp.ne.s32.totalorder %s86, %s89
    %p95 = scmp.eq.s32.totalorder %s8, 0
    %p96 = por %p94, %p95
    %p97 = scmp.ne.s32.totalorder %s86, %s89
    %p98 = scmp.eq.s32.totalorder %s13, 1
    %p99 = por %p97, %p98
    %p100 = scmp.ne.s32.totalorder %s89, %s90
    %p101 = scmp.eq.s32.totalorder %s13, 0
    %p102 = por %p100, %p101
    %p103 = scmp.ne.s32.totalorder %s89, %s90
    %p104 = scmp.eq.s32.totalorder %s14, 1
    %p105 = por %p103, %p104
    %p107 = scmp.ne.s32.totalorder %s90, %s106
    %p108 = scmp.eq.s32.totalorder %s14, 0
    %p109 = por %p107, %p108
    %p110 = scmp.le.s32.totalorder 1, %s8
    %p111 = scmp.lt.s32.totalorder %s8, 3
    %p112 = pnand %p110, %p111
    %p113 = pneg %p112
    // Predicated region
    $region9: #{correlation_layer.1} parent=5 // pred_check
      _
    $region10: #{correlation_layer.1} parent=5 // pred_check_branch
      %115 = sbr.rel (%p112) target = $region12
    $region11: #{correlation_layer.1} parent=5 // pred_region
      %s116 = ssub.s32 %s8, 1
    $region12: #{correlation_layer.1} parent=5 // pred_fallthru
      _
    %p117 = scmp.lt.s32.totalorder %s8, 2
    // Predicated region
    $region13: #{correlation_layer.1} parent=5 // pred_check
      %p118 = pneg %p117
    $region14: #{correlation_layer.1} parent=5 // pred_check_branch
      %120 = sbr.rel (%p118) target = $region16
    $region15: #{correlation_layer.1} parent=5 // pred_region
      // Predicated region
      $region17: #{correlation_layer.1} parent=15 // pred_check
        %p121 = pneg %p40
      $region18: #{correlation_layer.1} parent=15 // pred_check_branch
        %123 = sbr.rel (%p121) target = $region20
      $region19: #{correlation_layer.1} parent=15 // pred_region
        %p124 = scmp.lt.s32.totalorder %s15, 1
        %s125 = scalar_select %p124, %s15, 1
        %s126 = smul.addr %s125, 2
        %s127 = smul.addr %s126, 4
        %s128 = scalar_lea.vmem %s0, %s127
      $region20: #{correlation_layer.1} parent=15 // pred_fallthru
        _
      // Predicated region
      $region21: #{correlation_layer.1} parent=15 // pred_check
        %p129 = pneg %p68
      $region22: #{correlation_layer.1} parent=15 // pred_check_branch
        %131 = sbr.rel (%p129) target = $region24
      $region23: #{correlation_layer.1} parent=15 // pred_region
        %s132 = smul.u32 2, %s16
        %p133 = scmp.lt.s32.totalorder %s15, 1
        %s134 = scalar_select %p133, %s15, 1
        %p135 = scmp.lt.s32.totalorder %s132, 1
        %s136 = scalar_select %p135, %s132, 1
        %s137 = smul.addr %s134, 2
        %s138 = sadd.s32 %s136, %s137
        %s139 = smul.addr %s138, 4
        %s140 = scalar_lea.vmem %s1, %s139
        %s141 = smul.u32 2, %s16
      $region24: #{correlation_layer.1} parent=15 // pred_fallthru
        _
    $region16: #{correlation_layer.1} parent=5 // pred_fallthru
      _
    %p142 = scmp.le.s32.totalorder 1, %s8
    %p143 = scmp.lt.s32.totalorder %s8, 3
    %p144 = pnand %p142, %p143
    %p145 = pneg %p144
    // Predicated region
    $region25: #{correlation_layer.1} parent=5 // pred_check
      _
    $region26: #{correlation_layer.1} parent=5 // pred_check_branch
      %147 = sbr.rel (%p144) target = $region28
    $region27: #{correlation_layer.1} parent=5 // pred_region
      %s148 = ssub.s32 %s8, 1
      %p149 = scmp.lt.s32.totalorder %s17, 1
      %s150 = scalar_select %p149, %s17, 1
      %s151 = smul.addr %s150, 2
      %s152 = smul.addr %s151, 4
      %s153 = scalar_lea.vmem %s0, %s152
      %p154 = pneg %p46
      %p155 = pneg %p43
      %s156 = smul.u32 2, %s18
      %p157 = scmp.lt.s32.totalorder %s17, 1
      %s158 = scalar_select %p157, %s17, 1
      %p159 = scmp.lt.s32.totalorder %s156, 1
      %s160 = scalar_select %p159, %s156, 1
      %s161 = smul.addr %s158, 2
      %s162 = sadd.s32 %s160, %s161
      %s163 = smul.addr %s162, 4
      %s164 = scalar_lea.vmem %s1, %s163
      %p165 = pneg %p74
      %p166 = pneg %p71
      %p167 = pneg %p102
      %p168 = pneg %p99
      %s169 = smul.u32 2, %s18
      %p170 = scmp.lt.s32.totalorder %s17, 1
      %s171 = scalar_select %p170, %s17, 1
      %p172 = scmp.lt.s32.totalorder %s169, 1
      %s173 = scalar_select %p172, %s169, 1
      %s174 = smul.addr %s171, 64
      %s175 = sadd.s32 %s173, %s174
      %s176 = smul.addr %s175, 8
      %s177 = scalar_lea.vmem %s2, %s176
      %p178 = scmp.lt.s32.totalorder %s17, 1
      %s179 = scalar_select %p178, %s17, 1
      %s180 = smul.addr %s179, 2
      %s181 = smul.addr %s180, 4
      %s182 = scalar_lea.vmem %s0, %s181
      %s183 = smul.u32 2, %s18
      %p184 = scmp.lt.s32.totalorder %s17, 1
      %s185 = scalar_select %p184, %s17, 1
      %p186 = scmp.lt.s32.totalorder %s183, 1
      %s187 = scalar_select %p186, %s183, 1
      %s188 = smul.addr %s185, 2
      %s189 = sadd.s32 %s187, %s188
      %s190 = smul.addr %s189, 4
      %s191 = scalar_lea.vmem %s1, %s190
      %s192 = smul.u32 2, %s18
      %s193 = smul.u32 2, %s18
      %p194 = scmp.lt.s32.totalorder %s17, 1
      %s195 = scalar_select %p194, %s17, 1
      %p196 = scmp.lt.s32.totalorder %s193, 1
      %s197 = scalar_select %p196, %s193, 1
      %s198 = smul.addr %s195, 64
      %s199 = sadd.s32 %s197, %s198
      %s200 = smul.addr %s199, 8
      %s201 = scalar_lea.vmem %s2, %s200
      %s202 = smul.u32 2, %s18
      %p203 = scmp.eq.s32.totalorder %s18, 0
      // Predicated region
      $region29: #{correlation_layer.1} parent=27 // pred_check
        %p204 = pneg %p203
      $region30: #{correlation_layer.1} parent=27 // pred_check_branch
        %206 = sbr.rel (%p204) target = $region32
      $region31: #{correlation_layer.1} parent=27 // pred_region
        %v207 = vld [vmem:[%s182] sm:$0xff]
        %v208 = vmul.f32 %v207, %v207
        %210 = vst [vmem:[#allocation1] ss:$2 sm:$0xff] %v208
        %v211 = vld.sshfl [vmem:[#allocation1] sm:$0xff pattern:$0x75316420]
        %v212 = vld.sshfl [vmem:[#allocation1 + $0x8] sm:$0xff pattern:$0x75316420]
        %vm215 = vcmask 1043456
        %v216 = vsel %vm215, %v211, 0.0
        %v217 = vrot.slane %v216, 4
        %v218 = vadd.f32 %v216, %v217
        %v219 = vrot.slane %v218, 2
        %v220 = vadd.f32 %v218, %v219
        %v221 = vrot.slane %v220, 1
        %v222 = vadd.f32 %v220, %v221
        %v223 = vsel %vm215, %v212, 0.0
        %v224 = vrot.slane %v223, 4
        %v225 = vadd.f32 %v223, %v224
        %v226 = vrot.slane %v225, 2
        %v227 = vadd.f32 %v225, %v226
        %v228 = vrot.slane %v227, 1
        %v229 = vadd.f32 %v227, %v228
        %v230 = vadd.f32 %v222, 1e-06
        %v231 = vadd.f32 %v229, 1e-06
        %v232 = vrsqrt.pop %v230
        %v233 = vmul.f32 %v232, %v230
        %v234 = vmul.f32 %v233, %v232
        %v235 = vmul.f32 0.5, %v234
        %v236 = vsub.f32 1.5, %v235
        %v237 = vmul.f32 %v232, %v236
        %vm238 = vweird.f32 %v230
        %vm239 = vweird.f32 %v232
        %vm240 = vmor %vm238, %vm239
        %v241 = vsel %vm240, %v232, %v237
        %v242 = vrsqrt.pop %v231
        %v243 = vmul.f32 %v242, %v231
        %v244 = vmul.f32 %v243, %v242
        %v245 = vmul.f32 0.5, %v244
        %v246 = vsub.f32 1.5, %v245
        %v247 = vmul.f32 %v242, %v246
        %vm248 = vweird.f32 %v231
        %vm249 = vweird.f32 %v242
        %vm250 = vmor %vm248, %vm249
        %v251 = vsel %vm250, %v242, %v247
        %v254 = vrot.slane %v251, 4
        %v255 = vsel %vm215, %v241, %v254
        %v257 = vmul.f32 %v207, %v255
        %258 = vst [vmem:[#allocation2] sm:$0xff] %v257
      $region32: #{correlation_layer.1} parent=27 // pred_fallthru
        _
      %v259 = vld [vmem:[#allocation2] sm:$0xff]
      %v260 = vld [vmem:[%s191] sm:$0xff]
      %v261 = vmul.f32 %v260, %v260
      %263 = vst [vmem:[#allocation1] ss:$2 sm:$0xff] %v261
      %v264 = vld.sshfl [vmem:[#allocation1] sm:$0xff pattern:$0x75316420]
      %v265 = vld.sshfl [vmem:[#allocation1 + $0x8] sm:$0xff pattern:$0x75316420]
      %vm268 = vcmask 1043456
      %v269 = vsel %vm268, %v264, 0.0
      %v270 = vrot.slane %v269, 4
      %v271 = vadd.f32 %v269, %v270
      %v272 = vrot.slane %v271, 2
      %v273 = vadd.f32 %v271, %v272
      %v274 = vrot.slane %v273, 1
      %v275 = vadd.f32 %v273, %v274
      %v276 = vsel %vm268, %v265, 0.0
      %v277 = vrot.slane %v276, 4
      %v278 = vadd.f32 %v276, %v277
      %v279 = vrot.slane %v278, 2
      %v280 = vadd.f32 %v278, %v279
      %v281 = vrot.slane %v280, 1
      %v282 = vadd.f32 %v280, %v281
      %v283 = vadd.f32 %v275, 1e-06
      %v284 = vadd.f32 %v282, 1e-06
      %v285 = vrsqrt.pop %v283
      %v286 = vmul.f32 %v285, %v283
      %v287 = vmul.f32 %v286, %v285
      %v288 = vmul.f32 0.5, %v287
      %v289 = vsub.f32 1.5, %v288
      %v290 = vmul.f32 %v285, %v289
      %vm291 = vweird.f32 %v283
      %vm292 = vweird.f32 %v285
      %vm293 = vmor %vm291, %vm292
      %v294 = vsel %vm293, %v285, %v290
      %v295 = vrsqrt.pop %v284
      %v296 = vmul.f32 %v295, %v284
      %v297 = vmul.f32 %v296, %v295
      %v298 = vmul.f32 0.5, %v297
      %v299 = vsub.f32 1.5, %v298
      %v300 = vmul.f32 %v295, %v299
      %vm301 = vweird.f32 %v284
      %vm302 = vweird.f32 %v295
      %vm303 = vmor %vm301, %vm302
      %v304 = vsel %vm303, %v295, %v300
      %v307 = vrot.slane %v304, 4
      %v308 = vsel %vm268, %v294, %v307
      %v310 = vmul.f32 %v260, %v308
      %312 = vst [vmem:[#allocation1] ss:$2 sm:$0xff] %v259
      %v313 = vld.sshfl [vmem:[#allocation1] sm:$0xff pattern:$0x75316420]
      %v314 = vld.sshfl [vmem:[#allocation1 + $0x8] sm:$0xff pattern:$0x75316420]
      %317 = vxpose.xlu0.b32.start [1/16] %v313, 128
      %318 = vxpose.xlu0.b32.cont [2/16] 0.0, 128
      %319 = vxpose.xlu0.b32.cont [3/16] 0.0, 128
      %320 = vxpose.xlu0.b32.cont [4/16] 0.0, 128
      %321 = vxpose.xlu0.b32.cont [5/16] 0.0, 128
      %322 = vxpose.xlu0.b32.cont [6/16] 0.0, 128
      %323 = vxpose.xlu0.b32.cont [7/16] 0.0, 128
      %324 = vxpose.xlu0.b32.cont [8/16] 0.0, 128
      %325 = vxpose.xlu0.b32.cont [9/16] 0.0, 128
      %326 = vxpose.xlu0.b32.cont [10/16] 0.0, 128
      %327 = vxpose.xlu0.b32.cont [11/16] 0.0, 128
      %328 = vxpose.xlu0.b32.cont [12/16] 0.0, 128
      %329 = vxpose.xlu0.b32.cont [13/16] 0.0, 128
      %330 = vxpose.xlu0.b32.cont [14/16] 0.0, 128
      %331 = vxpose.xlu0.b32.cont [15/16] 0.0, 128
      %332 = vxpose.xlu0.b32.end [16/16] 0.0, 128
      %v333 = vpop.trf.xlu0
      %v334 = vpop.trf.xlu0
      %v335 = vpop.trf.xlu0
      %v336 = vpop.trf.xlu0
      %v337 = vpop.trf.xlu0
      %v338 = vpop.trf.xlu0
      %v339 = vpop.trf.xlu0
      %v340 = vpop.trf.xlu0
      %v341 = vpop.trf.xlu0
      %v342 = vpop.trf.xlu0
      %v343 = vpop.trf.xlu0
      %v344 = vpop.trf.xlu0
      %v345 = vpop.trf.xlu0
      %v346 = vpop.trf.xlu0
      %v347 = vpop.trf.xlu0
      %v348 = vpop.trf.xlu0
      %349 = vxpose.xlu0.b32.start [1/16] %v314, 128
      %350 = vxpose.xlu0.b32.cont [2/16] 0.0, 128
      %351 = vxpose.xlu0.b32.cont [3/16] 0.0, 128
      %352 = vxpose.xlu0.b32.cont [4/16] 0.0, 128
      %353 = vxpose.xlu0.b32.cont [5/16] 0.0, 128
      %354 = vxpose.xlu0.b32.cont [6/16] 0.0, 128
      %355 = vxpose.xlu0.b32.cont [7/16] 0.0, 128
      %356 = vxpose.xlu0.b32.cont [8/16] 0.0, 128
      %357 = vxpose.xlu0.b32.cont [9/16] 0.0, 128
      %358 = vxpose.xlu0.b32.cont [10/16] 0.0, 128
      %359 = vxpose.xlu0.b32.cont [11/16] 0.0, 128
      %360 = vxpose.xlu0.b32.cont [12/16] 0.0, 128
      %361 = vxpose.xlu0.b32.cont [13/16] 0.0, 128
      %362 = vxpose.xlu0.b32.cont [14/16] 0.0, 128
      %363 = vxpose.xlu0.b32.cont [15/16] 0.0, 128
      %364 = vxpose.xlu0.b32.end [16/16] 0.0, 128
      %v365 = vpop.trf.xlu0
      %v366 = vpop.trf.xlu0
      %v367 = vpop.trf.xlu0
      %v368 = vpop.trf.xlu0
      %v369 = vpop.trf.xlu0
      %v370 = vpop.trf.xlu0
      %v371 = vpop.trf.xlu0
      %v372 = vpop.trf.xlu0
      %v373 = vpop.trf.xlu0
      %v374 = vpop.trf.xlu0
      %v375 = vpop.trf.xlu0
      %v376 = vpop.trf.xlu0
      %v377 = vpop.trf.xlu0
      %v378 = vpop.trf.xlu0
      %v379 = vpop.trf.xlu0
      %v380 = vpop.trf.xlu0
      %382 = vst [vmem:[#allocation1] ss:$2 sm:$0xff] %v310
      %v383 = vld.sshfl [vmem:[#allocation1] sm:$0xff pattern:$0x75316420]
      %v384 = vld.sshfl [vmem:[#allocation1 + $0x8] sm:$0xff pattern:$0x75316420]
      %vm385 = vcmask 31744
      %v387 = vsel %vm385, %v333, 0
      %v390 = vsel %vm385, %v334, 0
      %v393 = vsel %vm385, %v335, 0
      %v396 = vsel %vm385, %v336, 0
      %v399 = vsel %vm385, %v337, 0
      %v402 = vsel %vm385, %v338, 0
      %v405 = vsel %vm385, %v339, 0
      %v408 = vsel %vm385, %v340, 0
      %v411 = vsel %vm385, %v341, 0
      %v414 = vsel %vm385, %v342, 0
      %v417 = vsel %vm385, %v343, 0
      %v420 = vsel %vm385, %v344, 0
      %v423 = vsel %vm385, %v345, 0
      %v426 = vsel %vm385, %v346, 0
      %v429 = vsel %vm385, %v347, 0
      %v432 = vsel %vm385, %v348, 0
      %v435 = vsel %vm385, %v365, 0
      %v438 = vsel %vm385, %v366, 0
      %v441 = vsel %vm385, %v367, 0
      %v444 = vsel %vm385, %v368, 0
      %v447 = vsel %vm385, %v369, 0
      %v450 = vsel %vm385, %v370, 0
      %v453 = vsel %vm385, %v371, 0
      %v456 = vsel %vm385, %v372, 0
      %v459 = vsel %vm385, %v373, 0
      %v462 = vsel %vm385, %v374, 0
      %v465 = vsel %vm385, %v375, 0
      %v468 = vsel %vm385, %v376, 0
      %v471 = vsel %vm385, %v377, 0
      %v474 = vsel %vm385, %v378, 0
      %v477 = vsel %vm385, %v379, 0
      %v480 = vsel %vm385, %v380, 0
      %v482 = vsel %vm268, %v383, 0
      %v484 = vsel %vm268, %v384, 0
      %486 = vmatpush.msra.mxu0 0.0
      %487 = vmatpush.msra.mxu0 0.0
      %488 = vmatpush.msra.mxu0 0.0
      %489 = vmatpush.msra.mxu0 0.0
      %490 = vmatpush.msra.mxu0 0.0
      %491 = vmatpush.msra.mxu0 0.0
      %492 = vmatpush.msra.mxu0 0.0
      %493 = vmatpush.msra.mxu0 0.0
      %494 = vmatpush.msra.mxu0 0.0
      %495 = vmatpush.msra.mxu0 0.0
      %496 = vmatpush.msra.mxu0 0.0
      %497 = vmatpush.msra.mxu0 0.0
      %498 = vmatpush.msra.mxu0 0.0
      %499 = vmatpush.msra.mxu0 0.0
      %500 = vmatpush.msra.mxu0 0.0
      %501 = vmatpush.msra.mxu0 %v482
      %502 = vmatmul.f32.gmra.mxu0 %v387
      %v503 = vpop.f32.mrf.mxu0
      %v504 = vadd.f32 0.0, %v503
      %505 = vmatmul.f32.gmra.mxu0 %v390
      %v506 = vpop.f32.mrf.mxu0
      %v507 = vadd.f32 0.0, %v506
      %508 = vmatmul.f32.gmra.mxu0 %v393
      %v509 = vpop.f32.mrf.mxu0
      %v510 = vadd.f32 0.0, %v509
      %511 = vmatmul.f32.gmra.mxu0 %v396
      %v512 = vpop.f32.mrf.mxu0
      %v513 = vadd.f32 0.0, %v512
      %514 = vmatmul.f32.gmra.mxu0 %v399
      %v515 = vpop.f32.mrf.mxu0
      %v516 = vadd.f32 0.0, %v515
      %517 = vmatmul.f32.gmra.mxu0 %v402
      %v518 = vpop.f32.mrf.mxu0
      %v519 = vadd.f32 0.0, %v518
      %520 = vmatmul.f32.gmra.mxu0 %v405
      %v521 = vpop.f32.mrf.mxu0
      %v522 = vadd.f32 0.0, %v521
      %523 = vmatmul.f32.gmra.mxu0 %v408
      %v524 = vpop.f32.mrf.mxu0
      %v525 = vadd.f32 0.0, %v524
      %526 = vmatmul.f32.gmra.mxu0 %v411
      %v527 = vpop.f32.mrf.mxu0
      %v528 = vadd.f32 0.0, %v527
      %529 = vmatmul.f32.gmra.mxu0 %v414
      %v530 = vpop.f32.mrf.mxu0
      %v531 = vadd.f32 0.0, %v530
      %532 = vmatmul.f32.gmra.mxu0 %v417
      %v533 = vpop.f32.mrf.mxu0
      %v534 = vadd.f32 0.0, %v533
      %535 = vmatmul.f32.gmra.mxu0 %v420
      %v536 = vpop.f32.mrf.mxu0
      %v537 = vadd.f32 0.0, %v536
      %538 = vmatmul.f32.gmra.mxu0 %v423
      %v539 = vpop.f32.mrf.mxu0
      %v540 = vadd.f32 0.0, %v539
      %541 = vmatmul.f32.gmra.mxu0 %v426
      %v542 = vpop.f32.mrf.mxu0
      %v543 = vadd.f32 0.0, %v542
      %544 = vmatmul.f32.gmra.mxu0 %v429
      %v545 = vpop.f32.mrf.mxu0
      %v546 = vadd.f32 0.0, %v545
      %547 = vmatmul.f32.gmra.mxu0 %v432
      %v548 = vpop.f32.mrf.mxu0
      %v549 = vadd.f32 0.0, %v548
      %550 = vmatmul.f32.gmra.mxu0 %v435
      %v551 = vpop.f32.mrf.mxu0
      %v552 = vadd.f32 0.0, %v551
      %553 = vmatmul.f32.gmra.mxu0 %v438
      %v554 = vpop.f32.mrf.mxu0
      %v555 = vadd.f32 0.0, %v554
      %556 = vmatmul.f32.gmra.mxu0 %v441
      %v557 = vpop.f32.mrf.mxu0
      %v558 = vadd.f32 0.0, %v557
      %559 = vmatmul.f32.gmra.mxu0 %v444
      %v560 = vpop.f32.mrf.mxu0
      %v561 = vadd.f32 0.0, %v560
      %562 = vmatmul.f32.gmra.mxu0 %v447
      %v563 = vpop.f32.mrf.mxu0
      %v564 = vadd.f32 0.0, %v563
      %565 = vmatmul.f32.gmra.mxu0 %v450
      %v566 = vpop.f32.mrf.mxu0
      %v567 = vadd.f32 0.0, %v566
      %568 = vmatmul.f32.gmra.mxu0 %v453
      %v569 = vpop.f32.mrf.mxu0
      %v570 = vadd.f32 0.0, %v569
      %571 = vmatmul.f32.gmra.mxu0 %v456
      %v572 = vpop.f32.mrf.mxu0
      %v573 = vadd.f32 0.0, %v572
      %574 = vmatmul.f32.gmra.mxu0 %v459
      %v575 = vpop.f32.mrf.mxu0
      %v576 = vadd.f32 0.0, %v575
      %577 = vmatmul.f32.gmra.mxu0 %v462
      %v578 = vpop.f32.mrf.mxu0
      %v579 = vadd.f32 0.0, %v578
      %580 = vmatmul.f32.gmra.mxu0 %v465
      %v581 = vpop.f32.mrf.mxu0
      %v582 = vadd.f32 0.0, %v581
      %583 = vmatmul.f32.gmra.mxu0 %v468
      %v584 = vpop.f32.mrf.mxu0
      %v585 = vadd.f32 0.0, %v584
      %586 = vmatmul.f32.gmra.mxu0 %v471
      %v587 = vpop.f32.mrf.mxu0
      %v588 = vadd.f32 0.0, %v587
      %589 = vmatmul.f32.gmra.mxu0 %v474
      %v590 = vpop.f32.mrf.mxu0
      %v591 = vadd.f32 0.0, %v590
      %592 = vmatmul.f32.gmra.mxu0 %v477
      %v593 = vpop.f32.mrf.mxu0
      %v594 = vadd.f32 0.0, %v593
      %595 = vmatmul.f32.gmra.mxu0 %v480
      %v596 = vpop.f32.mrf.mxu0
      %v597 = vadd.f32 0.0, %v596
      %598 = vdwg.mxu0
      %599 = vmatpush.msra.mxu0 0.0
      %600 = vmatpush.msra.mxu0 0.0
      %601 = vmatpush.msra.mxu0 0.0
      %602 = vmatpush.msra.mxu0 0.0
      %603 = vmatpush.msra.mxu0 0.0
      %604 = vmatpush.msra.mxu0 0.0
      %605 = vmatpush.msra.mxu0 0.0
      %606 = vmatpush.msra.mxu0 0.0
      %607 = vmatpush.msra.mxu0 0.0
      %608 = vmatpush.msra.mxu0 0.0
      %609 = vmatpush.msra.mxu0 0.0
      %610 = vmatpush.msra.mxu0 0.0
      %611 = vmatpush.msra.mxu0 0.0
      %612 = vmatpush.msra.mxu0 0.0
      %613 = vmatpush.msra.mxu0 0.0
      %614 = vmatpush.msra.mxu0 %v484
      %615 = vmatmul.f32.gmra.mxu0 %v387
      %v616 = vpop.f32.mrf.mxu0
      %v617 = vadd.f32 0.0, %v616
      %618 = vmatmul.f32.gmra.mxu0 %v390
      %v619 = vpop.f32.mrf.mxu0
      %v620 = vadd.f32 0.0, %v619
      %621 = vmatmul.f32.gmra.mxu0 %v393
      %v622 = vpop.f32.mrf.mxu0
      %v623 = vadd.f32 0.0, %v622
      %624 = vmatmul.f32.gmra.mxu0 %v396
      %v625 = vpop.f32.mrf.mxu0
      %v626 = vadd.f32 0.0, %v625
      %627 = vmatmul.f32.gmra.mxu0 %v399
      %v628 = vpop.f32.mrf.mxu0
      %v629 = vadd.f32 0.0, %v628
      %630 = vmatmul.f32.gmra.mxu0 %v402
      %v631 = vpop.f32.mrf.mxu0
      %v632 = vadd.f32 0.0, %v631
      %633 = vmatmul.f32.gmra.mxu0 %v405
      %v634 = vpop.f32.mrf.mxu0
      %v635 = vadd.f32 0.0, %v634
      %636 = vmatmul.f32.gmra.mxu0 %v408
      %v637 = vpop.f32.mrf.mxu0
      %v638 = vadd.f32 0.0, %v637
      %639 = vmatmul.f32.gmra.mxu0 %v411
      %v640 = vpop.f32.mrf.mxu0
      %v641 = vadd.f32 0.0, %v640
      %642 = vmatmul.f32.gmra.mxu0 %v414
      %v643 = vpop.f32.mrf.mxu0
      %v644 = vadd.f32 0.0, %v643
      %645 = vmatmul.f32.gmra.mxu0 %v417
      %v646 = vpop.f32.mrf.mxu0
      %v647 = vadd.f32 0.0, %v646
      %648 = vmatmul.f32.gmra.mxu0 %v420
      %v649 = vpop.f32.mrf.mxu0
      %v650 = vadd.f32 0.0, %v649
      %651 = vmatmul.f32.gmra.mxu0 %v423
      %v652 = vpop.f32.mrf.mxu0
      %v653 = vadd.f32 0.0, %v652
      %654 = vmatmul.f32.gmra.mxu0 %v426
      %v655 = vpop.f32.mrf.mxu0
      %v656 = vadd.f32 0.0, %v655
      %657 = vmatmul.f32.gmra.mxu0 %v429
      %v658 = vpop.f32.mrf.mxu0
      %v659 = vadd.f32 0.0, %v658
      %660 = vmatmul.f32.gmra.mxu0 %v432
      %v661 = vpop.f32.mrf.mxu0
      %v662 = vadd.f32 0.0, %v661
      %663 = vmatmul.f32.gmra.mxu0 %v435
      %v664 = vpop.f32.mrf.mxu0
      %v665 = vadd.f32 0.0, %v664
      %666 = vmatmul.f32.gmra.mxu0 %v438
      %v667 = vpop.f32.mrf.mxu0
      %v668 = vadd.f32 0.0, %v667
      %669 = vmatmul.f32.gmra.mxu0 %v441
      %v670 = vpop.f32.mrf.mxu0
      %v671 = vadd.f32 0.0, %v670
      %672 = vmatmul.f32.gmra.mxu0 %v444
      %v673 = vpop.f32.mrf.mxu0
      %v674 = vadd.f32 0.0, %v673
      %675 = vmatmul.f32.gmra.mxu0 %v447
      %v676 = vpop.f32.mrf.mxu0
      %v677 = vadd.f32 0.0, %v676
      %678 = vmatmul.f32.gmra.mxu0 %v450
      %v679 = vpop.f32.mrf.mxu0
      %v680 = vadd.f32 0.0, %v679
      %681 = vmatmul.f32.gmra.mxu0 %v453
      %v682 = vpop.f32.mrf.mxu0
      %v683 = vadd.f32 0.0, %v682
      %684 = vmatmul.f32.gmra.mxu0 %v456
      %v685 = vpop.f32.mrf.mxu0
      %v686 = vadd.f32 0.0, %v685
      %687 = vmatmul.f32.gmra.mxu0 %v459
      %v688 = vpop.f32.mrf.mxu0
      %v689 = vadd.f32 0.0, %v688
      %690 = vmatmul.f32.gmra.mxu0 %v462
      %v691 = vpop.f32.mrf.mxu0
      %v692 = vadd.f32 0.0, %v691
      %693 = vmatmul.f32.gmra.mxu0 %v465
      %v694 = vpop.f32.mrf.mxu0
      %v695 = vadd.f32 0.0, %v694
      %696 = vmatmul.f32.gmra.mxu0 %v468
      %v697 = vpop.f32.mrf.mxu0
      %v698 = vadd.f32 0.0, %v697
      %699 = vmatmul.f32.gmra.mxu0 %v471
      %v700 = vpop.f32.mrf.mxu0
      %v701 = vadd.f32 0.0, %v700
      %702 = vmatmul.f32.gmra.mxu0 %v474
      %v703 = vpop.f32.mrf.mxu0
      %v704 = vadd.f32 0.0, %v703
      %705 = vmatmul.f32.gmra.mxu0 %v477
      %v706 = vpop.f32.mrf.mxu0
      %v707 = vadd.f32 0.0, %v706
      %708 = vmatmul.f32.gmra.mxu0 %v480
      %v709 = vpop.f32.mrf.mxu0
      %v710 = vadd.f32 0.0, %v709
      %711 = vdwg.mxu0
      %v712 = vmax.f32 %v504, 0.0
      %v713 = vmax.f32 %v617, 0.0
      %v714 = vmax.f32 %v507, 0.0
      %v715 = vmax.f32 %v620, 0.0
      %v716 = vmax.f32 %v510, 0.0
      %v717 = vmax.f32 %v623, 0.0
      %v718 = vmax.f32 %v513, 0.0
      %v719 = vmax.f32 %v626, 0.0
      %v720 = vmax.f32 %v516, 0.0
      %v721 = vmax.f32 %v629, 0.0
      %v722 = vmax.f32 %v519, 0.0
      %v723 = vmax.f32 %v632, 0.0
      %v724 = vmax.f32 %v522, 0.0
      %v725 = vmax.f32 %v635, 0.0
      %v726 = vmax.f32 %v525, 0.0
      %v727 = vmax.f32 %v638, 0.0
      %v728 = vmax.f32 %v528, 0.0
      %v729 = vmax.f32 %v641, 0.0
      %v730 = vmax.f32 %v531, 0.0
      %v731 = vmax.f32 %v644, 0.0
      %v732 = vmax.f32 %v534, 0.0
      %v733 = vmax.f32 %v647, 0.0
      %v734 = vmax.f32 %v537, 0.0
      %v735 = vmax.f32 %v650, 0.0
      %v736 = vmax.f32 %v540, 0.0
      %v737 = vmax.f32 %v653, 0.0
      %v738 = vmax.f32 %v543, 0.0
      %v739 = vmax.f32 %v656, 0.0
      %v740 = vmax.f32 %v546, 0.0
      %v741 = vmax.f32 %v659, 0.0
      %v742 = vmax.f32 %v549, 0.0
      %v743 = vmax.f32 %v662, 0.0
      %v744 = vmax.f32 %v552, 0.0
      %v745 = vmax.f32 %v665, 0.0
      %v746 = vmax.f32 %v555, 0.0
      %v747 = vmax.f32 %v668, 0.0
      %v748 = vmax.f32 %v558, 0.0
      %v749 = vmax.f32 %v671, 0.0
      %v750 = vmax.f32 %v561, 0.0
      %v751 = vmax.f32 %v674, 0.0
      %v752 = vmax.f32 %v564, 0.0
      %v753 = vmax.f32 %v677, 0.0
      %v754 = vmax.f32 %v567, 0.0
      %v755 = vmax.f32 %v680, 0.0
      %v756 = vmax.f32 %v570, 0.0
      %v757 = vmax.f32 %v683, 0.0
      %v758 = vmax.f32 %v573, 0.0
      %v759 = vmax.f32 %v686, 0.0
      %v760 = vmax.f32 %v576, 0.0
      %v761 = vmax.f32 %v689, 0.0
      %v762 = vmax.f32 %v579, 0.0
      %v763 = vmax.f32 %v692, 0.0
      %v764 = vmax.f32 %v582, 0.0
      %v765 = vmax.f32 %v695, 0.0
      %v766 = vmax.f32 %v585, 0.0
      %v767 = vmax.f32 %v698, 0.0
      %v768 = vmax.f32 %v588, 0.0
      %v769 = vmax.f32 %v701, 0.0
      %v770 = vmax.f32 %v591, 0.0
      %v771 = vmax.f32 %v704, 0.0
      %v772 = vmax.f32 %v594, 0.0
      %v773 = vmax.f32 %v707, 0.0
      %v774 = vmax.f32 %v597, 0.0
      %v775 = vmax.f32 %v710, 0.0
      %v776 = vmul.f32 %v712, %v712
      %v777 = vmul.f32 %v713, %v713
      %v778 = vmul.f32 %v714, %v714
      %v779 = vmul.f32 %v715, %v715
      %v780 = vmul.f32 %v716, %v716
      %v781 = vmul.f32 %v717, %v717
      %v782 = vmul.f32 %v718, %v718
      %v783 = vmul.f32 %v719, %v719
      %v784 = vmul.f32 %v720, %v720
      %v785 = vmul.f32 %v721, %v721
      %v786 = vmul.f32 %v722, %v722
      %v787 = vmul.f32 %v723, %v723
      %v788 = vmul.f32 %v724, %v724
      %v789 = vmul.f32 %v725, %v725
      %v790 = vmul.f32 %v726, %v726
      %v791 = vmul.f32 %v727, %v727
      %v792 = vmul.f32 %v728, %v728
      %v793 = vmul.f32 %v729, %v729
      %v794 = vmul.f32 %v730, %v730
      %v795 = vmul.f32 %v731, %v731
      %v796 = vmul.f32 %v732, %v732
      %v797 = vmul.f32 %v733, %v733
      %v798 = vmul.f32 %v734, %v734
      %v799 = vmul.f32 %v735, %v735
      %v800 = vmul.f32 %v736, %v736
      %v801 = vmul.f32 %v737, %v737
      %v802 = vmul.f32 %v738, %v738
      %v803 = vmul.f32 %v739, %v739
      %v804 = vmul.f32 %v740, %v740
      %v805 = vmul.f32 %v741, %v741
      %v806 = vmul.f32 %v742, %v742
      %v807 = vmul.f32 %v743, %v743
      %v808 = vmul.f32 %v744, %v744
      %v809 = vmul.f32 %v745, %v745
      %v810 = vmul.f32 %v746, %v746
      %v811 = vmul.f32 %v747, %v747
      %v812 = vmul.f32 %v748, %v748
      %v813 = vmul.f32 %v749, %v749
      %v814 = vmul.f32 %v750, %v750
      %v815 = vmul.f32 %v751, %v751
      %v816 = vmul.f32 %v752, %v752
      %v817 = vmul.f32 %v753, %v753
      %v818 = vmul.f32 %v754, %v754
      %v819 = vmul.f32 %v755, %v755
      %v820 = vmul.f32 %v756, %v756
      %v821 = vmul.f32 %v757, %v757
      %v822 = vmul.f32 %v758, %v758
      %v823 = vmul.f32 %v759, %v759
      %v824 = vmul.f32 %v760, %v760
      %v825 = vmul.f32 %v761, %v761
      %v826 = vmul.f32 %v762, %v762
      %v827 = vmul.f32 %v763, %v763
      %v828 = vmul.f32 %v764, %v764
      %v829 = vmul.f32 %v765, %v765
      %v830 = vmul.f32 %v766, %v766
      %v831 = vmul.f32 %v767, %v767
      %v832 = vmul.f32 %v768, %v768
      %v833 = vmul.f32 %v769, %v769
      %v834 = vmul.f32 %v770, %v770
      %v835 = vmul.f32 %v771, %v771
      %v836 = vmul.f32 %v772, %v772
      %v837 = vmul.f32 %v773, %v773
      %v838 = vmul.f32 %v774, %v774
      %v839 = vmul.f32 %v775, %v775
      %840 = vmatpush.msra.mxu0 %v806
      %841 = vmatpush.msra.mxu0 %v804
      %842 = vmatpush.msra.mxu0 %v802
      %843 = vmatpush.msra.mxu0 %v800
      %844 = vmatpush.msra.mxu0 %v798
      %845 = vmatpush.msra.mxu0 %v796
      %846 = vmatpush.msra.mxu0 %v794
      %847 = vmatpush.msra.mxu0 %v792
      %848 = vmatpush.msra.mxu0 %v790
      %849 = vmatpush.msra.mxu0 %v788
      %850 = vmatpush.msra.mxu0 %v786
      %851 = vmatpush.msra.mxu0 %v784
      %852 = vmatpush.msra.mxu0 %v782
      %853 = vmatpush.msra.mxu0 %v780
      %854 = vmatpush.msra.mxu0 %v778
      %855 = vmatpush.msra.mxu0 %v776
      %856 = vmatmul.f32.gmra.mxu0 1.0
      %v857 = vpop.f32.mrf.mxu0
      %v858 = vadd.f32 0.0, %v857
      %859 = vdwg.mxu0
      %860 = vmatpush.msra.mxu0 %v838
      %861 = vmatpush.msra.mxu0 %v836
      %862 = vmatpush.msra.mxu0 %v834
      %863 = vmatpush.msra.mxu0 %v832
      %864 = vmatpush.msra.mxu0 %v830
      %865 = vmatpush.msra.mxu0 %v828
      %866 = vmatpush.msra.mxu0 %v826
      %867 = vmatpush.msra.mxu0 %v824
      %868 = vmatpush.msra.mxu0 %v822
      %869 = vmatpush.msra.mxu0 %v820
      %870 = vmatpush.msra.mxu0 %v818
      %871 = vmatpush.msra.mxu0 %v816
      %872 = vmatpush.msra.mxu0 %v814
      %873 = vmatpush.msra.mxu0 %v812
      %874 = vmatpush.msra.mxu0 %v810
      %875 = vmatpush.msra.mxu0 %v808
      %876 = vmatmul.f32.gmra.mxu0 1.0
      %v877 = vpop.f32.mrf.mxu0
      %v878 = vadd.f32 %v858, %v877
      %879 = vdwg.mxu0
      %880 = vmatpush.msra.mxu0 %v807
      %881 = vmatpush.msra.mxu0 %v805
      %882 = vmatpush.msra.mxu0 %v803
      %883 = vmatpush.msra.mxu0 %v801
      %884 = vmatpush.msra.mxu0 %v799
      %885 = vmatpush.msra.mxu0 %v797
      %886 = vmatpush.msra.mxu0 %v795
      %887 = vmatpush.msra.mxu0 %v793
      %888 = vmatpush.msra.mxu0 %v791
      %889 = vmatpush.msra.mxu0 %v789
      %890 = vmatpush.msra.mxu0 %v787
      %891 = vmatpush.msra.mxu0 %v785
      %892 = vmatpush.msra.mxu0 %v783
      %893 = vmatpush.msra.mxu0 %v781
      %894 = vmatpush.msra.mxu0 %v779
      %895 = vmatpush.msra.mxu0 %v777
      %896 = vmatmul.f32.gmra.mxu0 1.0
      %v897 = vpop.f32.mrf.mxu0
      %v898 = vadd.f32 0.0, %v897
      %899 = vdwg.mxu0
      %900 = vmatpush.msra.mxu0 %v839
      %901 = vmatpush.msra.mxu0 %v837
      %902 = vmatpush.msra.mxu0 %v835
      %903 = vmatpush.msra.mxu0 %v833
      %904 = vmatpush.msra.mxu0 %v831
      %905 = vmatpush.msra.mxu0 %v829
      %906 = vmatpush.msra.mxu0 %v827
      %907 = vmatpush.msra.mxu0 %v825
      %908 = vmatpush.msra.mxu0 %v823
      %909 = vmatpush.msra.mxu0 %v821
      %910 = vmatpush.msra.mxu0 %v819
      %911 = vmatpush.msra.mxu0 %v817
      %912 = vmatpush.msra.mxu0 %v815
      %913 = vmatpush.msra.mxu0 %v813
      %914 = vmatpush.msra.mxu0 %v811
      %915 = vmatpush.msra.mxu0 %v809
      %916 = vmatmul.f32.gmra.mxu0 1.0
      %v917 = vpop.f32.mrf.mxu0
      %v918 = vadd.f32 %v898, %v917
      %919 = vdwg.mxu0
      %v920 = vadd.f32 %v878, 1e-06
      %v921 = vadd.f32 %v918, 1e-06
      %v922 = vrsqrt.pop %v920
      %v923 = vmul.f32 %v922, %v920
      %v924 = vmul.f32 %v923, %v922
      %v925 = vmul.f32 0.5, %v924
      %v926 = vsub.f32 1.5, %v925
      %v927 = vmul.f32 %v922, %v926
      %vm928 = vweird.f32 %v920
      %vm929 = vweird.f32 %v922
      %vm930 = vmor %vm928, %vm929
      %v931 = vsel %vm930, %v922, %v927
      %v932 = vrsqrt.pop %v921
      %v933 = vmul.f32 %v932, %v921
      %v934 = vmul.f32 %v933, %v932
      %v935 = vmul.f32 0.5, %v934
      %v936 = vsub.f32 1.5, %v935
      %v937 = vmul.f32 %v932, %v936
      %vm938 = vweird.f32 %v921
      %vm939 = vweird.f32 %v932
      %vm940 = vmor %vm938, %vm939
      %v941 = vsel %vm940, %v932, %v937
      %942 = vst [vmem:[%s201] sm:$0xff] %v712
      %943 = vst [vmem:[%s201 + $0x8] sm:$0xff] %v713
      %944 = vst [vmem:[%s201 + $0x10] sm:$0xff] %v714
      %945 = vst [vmem:[%s201 + $0x18] sm:$0xff] %v715
      %946 = vst [vmem:[%s201 + $0x20] sm:$0xff] %v716
      %947 = vst [vmem:[%s201 + $0x28] sm:$0xff] %v717
      %948 = vst [vmem:[%s201 + $0x30] sm:$0xff] %v718
      %949 = vst [vmem:[%s201 + $0x38] sm:$0xff] %v719
      %950 = vst [vmem:[%s201 + $0x40] sm:$0xff] %v720
      %951 = vst [vmem:[%s201 + $0x48] sm:$0xff] %v721
      %952 = vst [vmem:[%s201 + $0x50] sm:$0xff] %v722
      %953 = vst [vmem:[%s201 + $0x58] sm:$0xff] %v723
      %954 = vst [vmem:[%s201 + $0x60] sm:$0xff] %v724
      %955 = vst [vmem:[%s201 + $0x68] sm:$0xff] %v725
      %956 = vst [vmem:[%s201 + $0x70] sm:$0xff] %v726
      %957 = vst [vmem:[%s201 + $0x78] sm:$0xff] %v727
      %958 = vst [vmem:[%s201 + $0x80] sm:$0xff] %v728
      %959 = vst [vmem:[%s201 + $0x88] sm:$0xff] %v729
      %960 = vst [vmem:[%s201 + $0x90] sm:$0xff] %v730
      %961 = vst [vmem:[%s201 + $0x98] sm:$0xff] %v731
      %962 = vst [vmem:[%s201 + $0xa0] sm:$0xff] %v732
      %963 = vst [vmem:[%s201 + $0xa8] sm:$0xff] %v733
      %964 = vst [vmem:[%s201 + $0xb0] sm:$0xff] %v734
      %965 = vst [vmem:[%s201 + $0xb8] sm:$0xff] %v735
      %966 = vst [vmem:[%s201 + $0xc0] sm:$0xff] %v736
      %967 = vst [vmem:[%s201 + $0xc8] sm:$0xff] %v737
      %968 = vst [vmem:[%s201 + $0xd0] sm:$0xff] %v738
      %969 = vst [vmem:[%s201 + $0xd8] sm:$0xff] %v739
      %970 = vst [vmem:[%s201 + $0xe0] sm:$0xff] %v740
      %971 = vst [vmem:[%s201 + $0xe8] sm:$0xff] %v741
      %972 = vst [vmem:[%s201 + $0xf0] sm:$0xff] %v742
      %973 = vst [vmem:[%s201 + $0xf8] sm:$0xff] %v743
      %974 = vst [vmem:[%s201 + $0x100] sm:$0xff] %v744
      %975 = vst [vmem:[%s201 + $0x108] sm:$0xff] %v745
      %976 = vst [vmem:[%s201 + $0x110] sm:$0xff] %v746
      %977 = vst [vmem:[%s201 + $0x118] sm:$0xff] %v747
      %978 = vst [vmem:[%s201 + $0x120] sm:$0xff] %v748
      %979 = vst [vmem:[%s201 + $0x128] sm:$0xff] %v749
      %980 = vst [vmem:[%s201 + $0x130] sm:$0xff] %v750
      %981 = vst [vmem:[%s201 + $0x138] sm:$0xff] %v751
      %982 = vst [vmem:[%s201 + $0x140] sm:$0xff] %v752
      %983 = vst [vmem:[%s201 + $0x148] sm:$0xff] %v753
      %984 = vst [vmem:[%s201 + $0x150] sm:$0xff] %v754
      %985 = vst [vmem:[%s201 + $0x158] sm:$0xff] %v755
      %986 = vst [vmem:[%s201 + $0x160] sm:$0xff] %v756
      %987 = vst [vmem:[%s201 + $0x168] sm:$0xff] %v757
      %988 = vst [vmem:[%s201 + $0x170] sm:$0xff] %v758
      %989 = vst [vmem:[%s201 + $0x178] sm:$0xff] %v759
      %990 = vst [vmem:[%s201 + $0x180] sm:$0xff] %v760
      %991 = vst [vmem:[%s201 + $0x188] sm:$0xff] %v761
      %992 = vst [vmem:[%s201 + $0x190] sm:$0xff] %v762
      %993 = vst [vmem:[%s201 + $0x198] sm:$0xff] %v763
      %994 = vst [vmem:[%s201 + $0x1a0] sm:$0xff] %v764
      %995 = vst [vmem:[%s201 + $0x1a8] sm:$0xff] %v765
      %996 = vst [vmem:[%s201 + $0x1b0] sm:$0xff] %v766
      %997 = vst [vmem:[%s201 + $0x1b8] sm:$0xff] %v767
      %998 = vst [vmem:[%s201 + $0x1c0] sm:$0xff] %v768
      %999 = vst [vmem:[%s201 + $0x1c8] sm:$0xff] %v769
      %1000 = vst [vmem:[%s201 + $0x1d0] sm:$0xff] %v770
      %1001 = vst [vmem:[%s201 + $0x1d8] sm:$0xff] %v771
      %1002 = vst [vmem:[%s201 + $0x1e0] sm:$0xff] %v772
      %1003 = vst [vmem:[%s201 + $0x1e8] sm:$0xff] %v773
      %1004 = vst [vmem:[%s201 + $0x1f0] sm:$0xff] %v774
      %1005 = vst [vmem:[%s201 + $0x1f8] sm:$0xff] %v775
      %v1006 = vld [vmem:[%s201] sm:$0xff]
      %v1007 = vld [vmem:[%s201 + $0x8] sm:$0xff]
      %v1008 = vld [vmem:[%s201 + $0x10] sm:$0xff]
      %v1009 = vld [vmem:[%s201 + $0x18] sm:$0xff]
      %v1010 = vld [vmem:[%s201 + $0x20] sm:$0xff]
      %v1011 = vld [vmem:[%s201 + $0x28] sm:$0xff]
      %v1012 = vld [vmem:[%s201 + $0x30] sm:$0xff]
      %v1013 = vld [vmem:[%s201 + $0x38] sm:$0xff]
      %v1014 = vld [vmem:[%s201 + $0x40] sm:$0xff]
      %v1015 = vld [vmem:[%s201 + $0x48] sm:$0xff]
      %v1016 = vld [vmem:[%s201 + $0x50] sm:$0xff]
      %v1017 = vld [vmem:[%s201 + $0x58] sm:$0xff]
      %v1018 = vld [vmem:[%s201 + $0x60] sm:$0xff]
      %v1019 = vld [vmem:[%s201 + $0x68] sm:$0xff]
      %v1020 = vld [vmem:[%s201 + $0x70] sm:$0xff]
      %v1021 = vld [vmem:[%s201 + $0x78] sm:$0xff]
      %v1022 = vld [vmem:[%s201 + $0x80] sm:$0xff]
      %v1023 = vld [vmem:[%s201 + $0x88] sm:$0xff]
      %v1024 = vld [vmem:[%s201 + $0x90] sm:$0xff]
      %v1025 = vld [vmem:[%s201 + $0x98] sm:$0xff]
      %v1026 = vld [vmem:[%s201 + $0xa0] sm:$0xff]
      %v1027 = vld [vmem:[%s201 + $0xa8] sm:$0xff]
      %v1028 = vld [vmem:[%s201 + $0xb0] sm:$0xff]
      %v1029 = vld [vmem:[%s201 + $0xb8] sm:$0xff]
      %v1030 = vld [vmem:[%s201 + $0xc0] sm:$0xff]
      %v1031 = vld [vmem:[%s201 + $0xc8] sm:$0xff]
      %v1032 = vld [vmem:[%s201 + $0xd0] sm:$0xff]
      %v1033 = vld [vmem:[%s201 + $0xd8] sm:$0xff]
      %v1034 = vld [vmem:[%s201 + $0xe0] sm:$0xff]
      %v1035 = vld [vmem:[%s201 + $0xe8] sm:$0xff]
      %v1036 = vld [vmem:[%s201 + $0xf0] sm:$0xff]
      %v1037 = vld [vmem:[%s201 + $0xf8] sm:$0xff]
      %v1038 = vld [vmem:[%s201 + $0x100] sm:$0xff]
      %v1039 = vld [vmem:[%s201 + $0x108] sm:$0xff]
      %v1040 = vld [vmem:[%s201 + $0x110] sm:$0xff]
      %v1041 = vld [vmem:[%s201 + $0x118] sm:$0xff]
      %v1042 = vld [vmem:[%s201 + $0x120] sm:$0xff]
      %v1043 = vld [vmem:[%s201 + $0x128] sm:$0xff]
      %v1044 = vld [vmem:[%s201 + $0x130] sm:$0xff]
      %v1045 = vld [vmem:[%s201 + $0x138] sm:$0xff]
      %v1046 = vld [vmem:[%s201 + $0x140] sm:$0xff]
      %v1047 = vld [vmem:[%s201 + $0x148] sm:$0xff]
      %v1048 = vld [vmem:[%s201 + $0x150] sm:$0xff]
      %v1049 = vld [vmem:[%s201 + $0x158] sm:$0xff]
      %v1050 = vld [vmem:[%s201 + $0x160] sm:$0xff]
      %v1051 = vld [vmem:[%s201 + $0x168] sm:$0xff]
      %v1052 = vld [vmem:[%s201 + $0x170] sm:$0xff]
      %v1053 = vld [vmem:[%s201 + $0x178] sm:$0xff]
      %v1054 = vld [vmem:[%s201 + $0x180] sm:$0xff]
      %v1055 = vld [vmem:[%s201 + $0x188] sm:$0xff]
      %v1056 = vld [vmem:[%s201 + $0x190] sm:$0xff]
      %v1057 = vld [vmem:[%s201 + $0x198] sm:$0xff]
      %v1058 = vld [vmem:[%s201 + $0x1a0] sm:$0xff]
      %v1059 = vld [vmem:[%s201 + $0x1a8] sm:$0xff]
      %v1060 = vld [vmem:[%s201 + $0x1b0] sm:$0xff]
      %v1061 = vld [vmem:[%s201 + $0x1b8] sm:$0xff]
      %v1062 = vld [vmem:[%s201 + $0x1c0] sm:$0xff]
      %v1063 = vld [vmem:[%s201 + $0x1c8] sm:$0xff]
      %v1064 = vld [vmem:[%s201 + $0x1d0] sm:$0xff]
      %v1065 = vld [vmem:[%s201 + $0x1d8] sm:$0xff]
      %v1066 = vld [vmem:[%s201 + $0x1e0] sm:$0xff]
      %v1067 = vld [vmem:[%s201 + $0x1e8] sm:$0xff]
      %v1068 = vld [vmem:[%s201 + $0x1f0] sm:$0xff]
      %v1069 = vld [vmem:[%s201 + $0x1f8] sm:$0xff]
      %v1070 = vperm.slane %v931, 0
      %v1071 = vperm.slane %v941, 0
      %v1072 = vmul.f32 %v1006, %v1070
      %v1073 = vmul.f32 %v1007, %v1071
      %v1074 = vmul.f32 %v1008, %v1070
      %v1075 = vmul.f32 %v1009, %v1071
      %v1076 = vmul.f32 %v1010, %v1070
      %v1077 = vmul.f32 %v1011, %v1071
      %v1078 = vmul.f32 %v1012, %v1070
      %v1079 = vmul.f32 %v1013, %v1071
      %v1080 = vmul.f32 %v1014, %v1070
      %v1081 = vmul.f32 %v1015, %v1071
      %v1082 = vmul.f32 %v1016, %v1070
      %v1083 = vmul.f32 %v1017, %v1071
      %v1084 = vmul.f32 %v1018, %v1070
      %v1085 = vmul.f32 %v1019, %v1071
      %v1086 = vmul.f32 %v1020, %v1070
      %v1087 = vmul.f32 %v1021, %v1071
      %v1088 = vmul.f32 %v1022, %v1070
      %v1089 = vmul.f32 %v1023, %v1071
      %v1090 = vmul.f32 %v1024, %v1070
      %v1091 = vmul.f32 %v1025, %v1071
      %v1092 = vmul.f32 %v1026, %v1070
      %v1093 = vmul.f32 %v1027, %v1071
      %v1094 = vmul.f32 %v1028, %v1070
      %v1095 = vmul.f32 %v1029, %v1071
      %v1096 = vmul.f32 %v1030, %v1070
      %v1097 = vmul.f32 %v1031, %v1071
      %v1098 = vmul.f32 %v1032, %v1070
      %v1099 = vmul.f32 %v1033, %v1071
      %v1100 = vmul.f32 %v1034, %v1070
      %v1101 = vmul.f32 %v1035, %v1071
      %v1102 = vmul.f32 %v1036, %v1070
      %v1103 = vmul.f32 %v1037, %v1071
      %v1104 = vmul.f32 %v1038, %v1070
      %v1105 = vmul.f32 %v1039, %v1071
      %v1106 = vmul.f32 %v1040, %v1070
      %v1107 = vmul.f32 %v1041, %v1071
      %v1108 = vmul.f32 %v1042, %v1070
      %v1109 = vmul.f32 %v1043, %v1071
      %v1110 = vmul.f32 %v1044, %v1070
      %v1111 = vmul.f32 %v1045, %v1071
      %v1112 = vmul.f32 %v1046, %v1070
      %v1113 = vmul.f32 %v1047, %v1071
      %v1114 = vmul.f32 %v1048, %v1070
      %v1115 = vmul.f32 %v1049, %v1071
      %v1116 = vmul.f32 %v1050, %v1070
      %v1117 = vmul.f32 %v1051, %v1071
      %v1118 = vmul.f32 %v1052, %v1070
      %v1119 = vmul.f32 %v1053, %v1071
      %v1120 = vmul.f32 %v1054, %v1070
      %v1121 = vmul.f32 %v1055, %v1071
      %v1122 = vmul.f32 %v1056, %v1070
      %v1123 = vmul.f32 %v1057, %v1071
      %v1124 = vmul.f32 %v1058, %v1070
      %v1125 = vmul.f32 %v1059, %v1071
      %v1126 = vmul.f32 %v1060, %v1070
      %v1127 = vmul.f32 %v1061, %v1071
      %v1128 = vmul.f32 %v1062, %v1070
      %v1129 = vmul.f32 %v1063, %v1071
      %v1130 = vmul.f32 %v1064, %v1070
      %v1131 = vmul.f32 %v1065, %v1071
      %v1132 = vmul.f32 %v1066, %v1070
      %v1133 = vmul.f32 %v1067, %v1071
      %v1134 = vmul.f32 %v1068, %v1070
      %v1135 = vmul.f32 %v1069, %v1071
      %1136 = vst [vmem:[%s201] sm:$0xff] %v1072
      %1137 = vst [vmem:[%s201 + $0x8] sm:$0xff] %v1073
      %1138 = vst [vmem:[%s201 + $0x10] sm:$0xff] %v1074
      %1139 = vst [vmem:[%s201 + $0x18] sm:$0xff] %v1075
      %1140 = vst [vmem:[%s201 + $0x20] sm:$0xff] %v1076
      %1141 = vst [vmem:[%s201 + $0x28] sm:$0xff] %v1077
      %1142 = vst [vmem:[%s201 + $0x30] sm:$0xff] %v1078
      %1143 = vst [vmem:[%s201 + $0x38] sm:$0xff] %v1079
      %1144 = vst [vmem:[%s201 + $0x40] sm:$0xff] %v1080
      %1145 = vst [vmem:[%s201 + $0x48] sm:$0xff] %v1081
      %1146 = vst [vmem:[%s201 + $0x50] sm:$0xff] %v1082
      %1147 = vst [vmem:[%s201 + $0x58] sm:$0xff] %v1083
      %1148 = vst [vmem:[%s201 + $0x60] sm:$0xff] %v1084
      %1149 = vst [vmem:[%s201 + $0x68] sm:$0xff] %v1085
      %1150 = vst [vmem:[%s201 + $0x70] sm:$0xff] %v1086
      %1151 = vst [vmem:[%s201 + $0x78] sm:$0xff] %v1087
      %1152 = vst [vmem:[%s201 + $0x80] sm:$0xff] %v1088
      %1153 = vst [vmem:[%s201 + $0x88] sm:$0xff] %v1089
      %1154 = vst [vmem:[%s201 + $0x90] sm:$0xff] %v1090
      %1155 = vst [vmem:[%s201 + $0x98] sm:$0xff] %v1091
      %1156 = vst [vmem:[%s201 + $0xa0] sm:$0xff] %v1092
      %1157 = vst [vmem:[%s201 + $0xa8] sm:$0xff] %v1093
      %1158 = vst [vmem:[%s201 + $0xb0] sm:$0xff] %v1094
      %1159 = vst [vmem:[%s201 + $0xb8] sm:$0xff] %v1095
      %1160 = vst [vmem:[%s201 + $0xc0] sm:$0xff] %v1096
      %1161 = vst [vmem:[%s201 + $0xc8] sm:$0xff] %v1097
      %1162 = vst [vmem:[%s201 + $0xd0] sm:$0xff] %v1098
      %1163 = vst [vmem:[%s201 + $0xd8] sm:$0xff] %v1099
      %1164 = vst [vmem:[%s201 + $0xe0] sm:$0xff] %v1100
      %1165 = vst [vmem:[%s201 + $0xe8] sm:$0xff] %v1101
      %1166 = vst [vmem:[%s201 + $0xf0] sm:$0xff] %v1102
      %1167 = vst [vmem:[%s201 + $0xf8] sm:$0xff] %v1103
      %1168 = vst [vmem:[%s201 + $0x100] sm:$0xff] %v1104
      %1169 = vst [vmem:[%s201 + $0x108] sm:$0xff] %v1105
      %1170 = vst [vmem:[%s201 + $0x110] sm:$0xff] %v1106
      %1171 = vst [vmem:[%s201 + $0x118] sm:$0xff] %v1107
      %1172 = vst [vmem:[%s201 + $0x120] sm:$0xff] %v1108
      %1173 = vst [vmem:[%s201 + $0x128] sm:$0xff] %v1109
      %1174 = vst [vmem:[%s201 + $0x130] sm:$0xff] %v1110
      %1175 = vst [vmem:[%s201 + $0x138] sm:$0xff] %v1111
      %1176 = vst [vmem:[%s201 + $0x140] sm:$0xff] %v1112
      %1177 = vst [vmem:[%s201 + $0x148] sm:$0xff] %v1113
      %1178 = vst [vmem:[%s201 + $0x150] sm:$0xff] %v1114
      %1179 = vst [vmem:[%s201 + $0x158] sm:$0xff] %v1115
      %1180 = vst [vmem:[%s201 + $0x160] sm:$0xff] %v1116
      %1181 = vst [vmem:[%s201 + $0x168] sm:$0xff] %v1117
      %1182 = vst [vmem:[%s201 + $0x170] sm:$0xff] %v1118
      %1183 = vst [vmem:[%s201 + $0x178] sm:$0xff] %v1119
      %1184 = vst [vmem:[%s201 + $0x180] sm:$0xff] %v1120
      %1185 = vst [vmem:[%s201 + $0x188] sm:$0xff] %v1121
      %1186 = vst [vmem:[%s201 + $0x190] sm:$0xff] %v1122
      %1187 = vst [vmem:[%s201 + $0x198] sm:$0xff] %v1123
      %1188 = vst [vmem:[%s201 + $0x1a0] sm:$0xff] %v1124
      %1189 = vst [vmem:[%s201 + $0x1a8] sm:$0xff] %v1125
      %1190 = vst [vmem:[%s201 + $0x1b0] sm:$0xff] %v1126
      %1191 = vst [vmem:[%s201 + $0x1b8] sm:$0xff] %v1127
      %1192 = vst [vmem:[%s201 + $0x1c0] sm:$0xff] %v1128
      %1193 = vst [vmem:[%s201 + $0x1c8] sm:$0xff] %v1129
      %1194 = vst [vmem:[%s201 + $0x1d0] sm:$0xff] %v1130
      %1195 = vst [vmem:[%s201 + $0x1d8] sm:$0xff] %v1131
      %1196 = vst [vmem:[%s201 + $0x1e0] sm:$0xff] %v1132
      %1197 = vst [vmem:[%s201 + $0x1e8] sm:$0xff] %v1133
      %1198 = vst [vmem:[%s201 + $0x1f0] sm:$0xff] %v1134
      %1199 = vst [vmem:[%s201 + $0x1f8] sm:$0xff] %v1135
      %s1200 = smul.u32 2, %s18
      %p1201 = scmp.lt.s32.totalorder %s17, 1
      %s1202 = scalar_select %p1201, %s17, 1
      %p1203 = scmp.lt.s32.totalorder %s1200, 1
      %s1204 = scalar_select %p1203, %s1200, 1
      %s1205 = smul.addr %s1202, 64
      %s1206 = sadd.s32 %s1204, %s1205
      %s1207 = smul.addr %s1206, 8
      %s1208 = scalar_lea.vmem %s2, %s1207
      // Predicated region
      $region33: #{correlation_layer.1} parent=27 // pred_check
        %p1209 = pneg %p99
      $region34: #{correlation_layer.1} parent=27 // pred_check_branch
        %1211 = sbr.rel (%p1209) target = $region36
      $region35: #{correlation_layer.1} parent=27 // pred_region
        %s1212 = smul.u32 2, %s18
      $region36: #{correlation_layer.1} parent=27 // pred_fallthru
        _
    $region28: #{correlation_layer.1} parent=5 // pred_fallthru
      _
    %p1213 = scmp.le.s32.totalorder 2, %s8
    // Predicated region
    $region37: #{correlation_layer.1} parent=5 // pred_check
      %p1214 = pneg %p1213
    $region38: #{correlation_layer.1} parent=5 // pred_check_branch
      %1216 = sbr.rel (%p1214) target = $region40
    $region39: #{correlation_layer.1} parent=5 // pred_region
      %s1217 = ssub.s32 %s8, 2
      // Predicated region
      $region41: #{correlation_layer.1} parent=39 // pred_check
        %p1218 = pneg %p105
      $region42: #{correlation_layer.1} parent=39 // pred_check_branch
        %1220 = sbr.rel (%p1218) target = $region44
      $region43: #{correlation_layer.1} parent=39 // pred_region
        %s1221 = smul.u32 2, %s20
        %p1222 = scmp.lt.s32.totalorder %s19, 1
        %s1223 = scalar_select %p1222, %s19, 1
        %p1224 = scmp.lt.s32.totalorder %s1221, 1
        %s1225 = scalar_select %p1224, %s1221, 1
        %s1226 = smul.addr %s1223, 64
        %s1227 = sadd.s32 %s1225, %s1226
        %s1228 = smul.addr %s1227, 8
        %s1229 = scalar_lea.vmem %s2, %s1228
      $region44: #{correlation_layer.1} parent=39 // pred_fallthru
        _
    $region40: #{correlation_layer.1} parent=5 // pred_fallthru
      _
  $region6: #{correlation_layer.1} parent=0 // loop_footer
    %s12 = sadd.s32 1, %s8
  $region7: #{correlation_layer.1} parent=0 // loop_footer_branch
    %7 = sbr.rel target = $region3
  $region8: #{correlation_layer.1} parent=0 // loop_exit
    _

</llo_original>
